<compile_context>
chip_gen: v5e
topology: v5e:2x2
jax: 0.10.0
libtpu: 0.0.40
codegen_flags: <defaults>
</compile_context>

<pallas_src>
import math

import jax
import jax.numpy as jnp
from jax.experimental import pallas as pl
from jax.experimental.pallas import tpu as pltpu


def _critic_kernel(qp_ref, s_ref, g_ref, a_ref,
                   w1s_ref, w1g_ref, w1a_ref, b1_ref,
                   w2_ref, b2_ref, w3_ref, o_ref):
    f32 = jnp.float32
    bf16 = jnp.bfloat16

    # Inputs for this batch tile (cast to bf16 for the MXU; f32 accumulate).
    s = s_ref[...].astype(bf16)
    g = g_ref[...].astype(bf16)
    a = a_ref[...].astype(bf16)

    # Layer 1: fused "concat" via split weights.  (TILE_B, 64) f32.
    h1 = jnp.dot(s, w1s_ref[...].astype(bf16), preferred_element_type=f32)
    h1 = h1 + jnp.dot(g, w1g_ref[...].astype(bf16), preferred_element_type=f32)
    h1 = h1 + jnp.dot(a, w1a_ref[...].astype(bf16), preferred_element_type=f32)
    h1 = jnp.maximum(h1 + b1_ref[...], 0.0)

    # Layer 2: (TILE_B, 64) f32.
    h2 = jnp.dot(h1.astype(bf16), w2_ref[...].astype(bf16),
                 preferred_element_type=f32)
    h2 = jnp.maximum(h2 + b2_ref[...], 0.0)

    # Output layer (out_features == 1), computed so the result is a lane-dense
    # (1, TILE_B) row: contract w3_row (1, 64) with h2 (TILE_B, 64) over the
    # feature axis (same pattern as q @ k.T).  b3 is pre-folded into qp[0].
    h3 = jax.lax.dot_general(w3_ref[...], h2, (((1,), (1,)), ((), ())),
                             preferred_element_type=f32)          # (1, TILE_B)

    # q = sigmoid(h3 + (b3 + q_offset)) * q_limit ; scalars read from SMEM.
    q = jax.nn.sigmoid(h3 + qp_ref[0]) * qp_ref[1]
    o_ref[0] = q.astype(o_ref.dtype)                              # (1, TILE_B)


def critic_forward(state, goal, action, params, *, q_offset, q_limit,
                   tile_b=512):
    """Critic forward pass as a single batch-tiled Pallas kernel.

    state:(B,Sd)  goal:(B,Gd)  action:(B,Ad); params as produced by
    init_critic_params (weights stored [in, out]).  Returns (B, 1) float32.
    """
    B = state.shape[0]
    sd, gd, ad = state.shape[1], goal.shape[1], action.shape[1]
    w1, b1, w2, b2, w3, b3 = params
    H = w1.shape[1]

    # Split W1 by input source so no activation concat is needed.
    w1_s = w1[:sd]
    w1_g = w1[sd:sd + gd]
    w1_a = w1[sd + gd:sd + gd + ad]

    b1 = b1.reshape(1, H).astype(jnp.float32)
    b2 = b2.reshape(1, H).astype(jnp.float32)
    w3_row = w3.reshape(1, H).astype(jnp.float32)

    # SMEM scalars: [b3 + q_offset, q_limit].
    q_off = jnp.asarray(q_offset, jnp.float32)
    q_lim = jnp.asarray(q_limit, jnp.float32)
    qparams = jnp.stack([b3.reshape(()).astype(jnp.float32) + q_off, q_lim])

    # Batch tile: multiple of 8, no larger than the (8-rounded) batch.
    tile_b = min(int(tile_b), ((B + 7) // 8) * 8)
    tile_b = max(8, (tile_b // 8) * 8)
    num_tiles = pl.cdiv(B, tile_b)

    def batch_spec(d):
        return pl.BlockSpec((tile_b, d), lambda i: (i, 0))

    def const_spec(shape):
        return pl.BlockSpec(shape, lambda i: (0,) * len(shape))

    out = pl.pallas_call(
        _critic_kernel,
        out_shape=jax.ShapeDtypeStruct((num_tiles, 1, tile_b), jnp.float32),
        grid=(num_tiles,),
        in_specs=[
            pl.BlockSpec(memory_space=pltpu.MemorySpace.SMEM),  # qparams (2,)
            batch_spec(sd),                                     # state
            batch_spec(gd),                                     # goal
            batch_spec(ad),                                     # action
            const_spec(w1_s.shape),                             # W1_s
            const_spec(w1_g.shape),                             # W1_g
            const_spec(w1_a.shape),                             # W1_a
            const_spec((1, H)),                                 # b1
            const_spec((H, H)),                                 # W2
            const_spec((1, H)),                                 # b2
            const_spec((1, H)),                                 # w3_row
        ],
        out_specs=pl.BlockSpec((1, 1, tile_b), lambda i: (i, 0, 0)),
        compiler_params=pltpu.CompilerParams(
            dimension_semantics=("parallel",)),
    )(qparams, state, goal, action, w1_s, w1_g, w1_a, b1, w2, b2, w3_row)

    # Lane-dense (num_tiles, 1, tile_b) -> (B, 1); pure layout plumbing.
    return out.reshape(-1)[:B].reshape(B, 1)


def init_critic_params(key, state_dim, goal_dim, action_dim, hidden=64):
    """Deterministic parameter init mirroring the PyTorch module's init."""
    in_dim = state_dim + action_dim + goal_dim
    k1, k2, k3, k4, k5, k6 = jax.random.split(key, 6)

    def uniform(k, shape, bound):
        return jax.random.uniform(k, shape, jnp.float32, -bound, bound)

    fan1 = 1.0 / math.sqrt(in_dim)
    fan2 = 1.0 / math.sqrt(hidden)
    # Weights stored as [in, out] (transposed vs. torch's [out, in]).
    w1 = uniform(k1, (in_dim, hidden), fan1)
    b1 = uniform(k2, (hidden,), fan1)
    w2 = uniform(k3, (hidden, hidden), fan2)
    b2 = uniform(k4, (hidden,), fan2)
    # Output layer: uniform(-0.003, 0.003) overrides the fan-in init.
    w3 = uniform(k5, (hidden, 1), 0.003)
    b3 = uniform(k6, (1,), 0.003)
    return (w1, b1, w2, b2, w3, b3)


if __name__ == "__main__":
    state_dim = 12
    goal_dim = 5       # env.end_goal_dim / env.subgoal_dim
    action_dim = 3     # env.action_dim

    time_scale = 10.0  # FLAGS.time_scale
    q_limit = -time_scale
    q_init = -0.067
    q_offset = -math.log(q_limit / q_init - 1.0)

    key = jax.random.PRNGKey(0)
    params = init_critic_params(jax.random.fold_in(key, 999),
                                state_dim, goal_dim, action_dim)
    w1, b1, w2, b2, w3, b3 = params

    def reference(state, goal, action):
        x = jnp.concatenate([state, goal, action], axis=1)
        h1 = jnp.maximum(x @ w1 + b1, 0.0)
        h2 = jnp.maximum(h1 @ w2 + b2, 0.0)
        return jax.nn.sigmoid(h2 @ w3 + b3 + q_offset) * q_limit

    # Two cases: tiny batch (single tile) and a multi-tile batch with a
    # partial final block (exercises the grid / partial-block path).
    for b, tb in [(8, 512), (300, 128)]:
        k_s, k_g, k_a = jax.random.split(jax.random.fold_in(key, b), 3)
        state = jax.random.normal(k_s, (b, state_dim), jnp.float32)
        goal = jax.random.normal(k_g, (b, goal_dim), jnp.float32)
        action = jax.random.normal(k_a, (b, action_dim), jnp.float32)

        out = critic_forward(state, goal, action, params,
                             q_offset=q_offset, q_limit=q_limit, tile_b=tb)
        out = jax.block_until_ready(out)

        ref = reference(state, goal, action)
        assert out.shape == (b, 1)
        # bf16 matmuls -> slightly loosened tolerance vs the f32 reference.
        assert jnp.allclose(out, ref, atol=1e-2, rtol=1e-2), (
            "max abs err = %g" % float(jnp.max(jnp.abs(out - ref))))

    print("KERNEL_OK")
</pallas_src>

<mosaic_0001>
module attributes {stable_mosaic.version = 11 : i64} {
  func.func @_critic_kernel(%arg0: i32, %arg1: memref<2xf32, #tpu.memory_space<smem>>, %arg2: memref<8x12xf32, #tpu.memory_space<vmem>>, %arg3: memref<8x5xf32, #tpu.memory_space<vmem>>, %arg4: memref<8x3xf32, #tpu.memory_space<vmem>>, %arg5: memref<12x64xf32, #tpu.memory_space<vmem>>, %arg6: memref<5x64xf32, #tpu.memory_space<vmem>>, %arg7: memref<3x64xf32, #tpu.memory_space<vmem>>, %arg8: memref<1x64xf32, #tpu.memory_space<vmem>>, %arg9: memref<64x64xf32, #tpu.memory_space<vmem>>, %arg10: memref<1x64xf32, #tpu.memory_space<vmem>>, %arg11: memref<1x64xf32, #tpu.memory_space<vmem>>, %arg12: memref<1x1x8xf32, #tpu.memory_space<vmem>>) attributes {dimension_semantics = [#tpu.dimension_semantics<parallel>], iteration_bounds = array<i64: 1>, scalar_prefetch = 0 : i64, scratch_operands = 0 : i64, tpu.core_type = #tpu.core_type<tc>, window_params = [{transform_indices = @transform_0, window_bounds = array<i64: 2>}, {transform_indices = @transform_1, window_bounds = array<i64: 8, 12>}, {transform_indices = @transform_2, window_bounds = array<i64: 8, 5>}, {transform_indices = @transform_3, window_bounds = array<i64: 8, 3>}, {pipeline_mode = #tpu.pipeline_mode<synchronous>, transform_indices = @transform_4, window_bounds = array<i64: 12, 64>}, {pipeline_mode = #tpu.pipeline_mode<synchronous>, transform_indices = @transform_5, window_bounds = array<i64: 5, 64>}, {pipeline_mode = #tpu.pipeline_mode<synchronous>, transform_indices = @transform_6, window_bounds = array<i64: 3, 64>}, {pipeline_mode = #tpu.pipeline_mode<synchronous>, transform_indices = @transform_7, window_bounds = array<i64: 1, 64>}, {pipeline_mode = #tpu.pipeline_mode<synchronous>, transform_indices = @transform_8, window_bounds = array<i64: 64, 64>}, {pipeline_mode = #tpu.pipeline_mode<synchronous>, transform_indices = @transform_9, window_bounds = array<i64: 1, 64>}, {pipeline_mode = #tpu.pipeline_mode<synchronous>, transform_indices = @transform_10, window_bounds = array<i64: 1, 64>}, {transform_indices = @transform_11, window_bounds = array<i64: 1, 1, 8>}]} {
    %c0 = arith.constant 0 : index
    %c0_0 = arith.constant 0 : index
    %0 = vector.load %arg2[%c0, %c0_0] : memref<8x12xf32, #tpu.memory_space<vmem>>, vector<8x12xf32>
    %1 = arith.truncf %0 : vector<8x12xf32> to vector<8x12xbf16>
    %c0_1 = arith.constant 0 : index
    %c0_2 = arith.constant 0 : index
    %2 = vector.load %arg3[%c0_1, %c0_2] : memref<8x5xf32, #tpu.memory_space<vmem>>, vector<8x5xf32>
    %3 = arith.truncf %2 : vector<8x5xf32> to vector<8x5xbf16>
    %c0_3 = arith.constant 0 : index
    %c0_4 = arith.constant 0 : index
    %4 = vector.load %arg4[%c0_3, %c0_4] : memref<8x3xf32, #tpu.memory_space<vmem>>, vector<8x3xf32>
    %5 = arith.truncf %4 : vector<8x3xf32> to vector<8x3xbf16>
    %c0_5 = arith.constant 0 : index
    %c0_6 = arith.constant 0 : index
    %6 = vector.load %arg5[%c0_5, %c0_6] : memref<12x64xf32, #tpu.memory_space<vmem>>, vector<12x64xf32>
    %7 = arith.truncf %6 : vector<12x64xf32> to vector<12x64xbf16>
    %cst = arith.constant dense<0.000000e+00> : vector<8x64xf32>
    %8 = tpu.matmul %1, %7, %cst {dimension_numbers = #tpu.dot_dimension_numbers<[1], [0], [0], [1], [0, 0, 1, 1], [], []>} : vector<8x12xbf16>, vector<12x64xbf16>, vector<8x64xf32> -> vector<8x64xf32>
    %c0_7 = arith.constant 0 : index
    %c0_8 = arith.constant 0 : index
    %9 = vector.load %arg6[%c0_7, %c0_8] : memref<5x64xf32, #tpu.memory_space<vmem>>, vector<5x64xf32>
    %10 = arith.truncf %9 : vector<5x64xf32> to vector<5x64xbf16>
    %cst_9 = arith.constant dense<0.000000e+00> : vector<8x64xf32>
    %11 = tpu.matmul %3, %10, %cst_9 {dimension_numbers = #tpu.dot_dimension_numbers<[1], [0], [0], [1], [0, 0, 1, 1], [], []>} : vector<8x5xbf16>, vector<5x64xbf16>, vector<8x64xf32> -> vector<8x64xf32>
    %12 = arith.addf %8, %11 : vector<8x64xf32>
    %c0_10 = arith.constant 0 : index
    %c0_11 = arith.constant 0 : index
    %13 = vector.load %arg7[%c0_10, %c0_11] : memref<3x64xf32, #tpu.memory_space<vmem>>, vector<3x64xf32>
    %14 = arith.truncf %13 : vector<3x64xf32> to vector<3x64xbf16>
    %cst_12 = arith.constant dense<0.000000e+00> : vector<8x64xf32>
    %15 = tpu.matmul %5, %14, %cst_12 {dimension_numbers = #tpu.dot_dimension_numbers<[1], [0], [0], [1], [0, 0, 1, 1], [], []>} : vector<8x3xbf16>, vector<3x64xbf16>, vector<8x64xf32> -> vector<8x64xf32>
    %16 = arith.addf %12, %15 : vector<8x64xf32>
    %c0_13 = arith.constant 0 : index
    %c0_14 = arith.constant 0 : index
    %17 = vector.load %arg8[%c0_13, %c0_14] : memref<1x64xf32, #tpu.memory_space<vmem>>, vector<1x64xf32>
    %18 = vector.broadcast %17 : vector<1x64xf32> to vector<8x64xf32>
    %19 = arith.addf %16, %18 : vector<8x64xf32>
    %cst_15 = arith.constant 0.000000e+00 : f32
    %20 = vector.broadcast %cst_15 : f32 to vector<8x64xf32>
    %21 = arith.maximumf %19, %20 : vector<8x64xf32>
    %22 = arith.truncf %21 : vector<8x64xf32> to vector<8x64xbf16>
    %c0_16 = arith.constant 0 : index
    %c0_17 = arith.constant 0 : index
    %23 = vector.load %arg9[%c0_16, %c0_17] : memref<64x64xf32, #tpu.memory_space<vmem>>, vector<64x64xf32>
    %24 = arith.truncf %23 : vector<64x64xf32> to vector<64x64xbf16>
    %cst_18 = arith.constant dense<0.000000e+00> : vector<8x64xf32>
    %25 = tpu.matmul %22, %24, %cst_18 {dimension_numbers = #tpu.dot_dimension_numbers<[1], [0], [0], [1], [0, 0, 1, 1], [], []>} : vector<8x64xbf16>, vector<64x64xbf16>, vector<8x64xf32> -> vector<8x64xf32>
    %c0_19 = arith.constant 0 : index
    %c0_20 = arith.constant 0 : index
    %26 = vector.load %arg10[%c0_19, %c0_20] : memref<1x64xf32, #tpu.memory_space<vmem>>, vector<1x64xf32>
    %27 = vector.broadcast %26 : vector<1x64xf32> to vector<8x64xf32>
    %28 = arith.addf %25, %27 : vector<8x64xf32>
    %cst_21 = arith.constant 0.000000e+00 : f32
    %29 = vector.broadcast %cst_21 : f32 to vector<8x64xf32>
    %30 = arith.maximumf %28, %29 : vector<8x64xf32>
    %c0_22 = arith.constant 0 : index
    %c0_23 = arith.constant 0 : index
    %31 = vector.load %arg11[%c0_22, %c0_23] : memref<1x64xf32, #tpu.memory_space<vmem>>, vector<1x64xf32>
    %cst_24 = arith.constant dense<0.000000e+00> : vector<1x8xf32>
    %32 = tpu.matmul %31, %30, %cst_24 {dimension_numbers = #tpu.dot_dimension_numbers<[1], [1], [0], [0], [0, 0, 1, 0], [], []>} : vector<1x64xf32>, vector<8x64xf32>, vector<1x8xf32> -> vector<1x8xf32>
    %c0_25 = arith.constant 0 : index
    %33 = memref.load %arg1[%c0_25] : memref<2xf32, #tpu.memory_space<smem>>
    %34 = vector.broadcast %33 : f32 to vector<1x8xf32>
    %35 = arith.addf %32, %34 : vector<1x8xf32>
    %36 = arith.negf %35 : vector<1x8xf32>
    %37 = math.exp %36 : vector<1x8xf32>
    %cst_26 = arith.constant 1.000000e+00 : f32
    %38 = vector.broadcast %cst_26 : f32 to vector<1x8xf32>
    %39 = arith.addf %38, %37 : vector<1x8xf32>
    %40 = arith.divf %38, %39 : vector<1x8xf32>
    %c1 = arith.constant 1 : index
    %41 = memref.load %arg1[%c1] : memref<2xf32, #tpu.memory_space<smem>>
    %42 = vector.broadcast %41 : f32 to vector<1x8xf32>
    %43 = arith.mulf %40, %42 : vector<1x8xf32>
    %c0_27 = arith.constant 0 : index
    %c0_28 = arith.constant 0 : index
    %c0_29 = arith.constant 0 : index
    %44 = vector.load %arg12[%c0_27, %c0_28, %c0_29] : memref<1x1x8xf32, #tpu.memory_space<vmem>>, vector<1x1x8xf32>
    %45 = vector.shape_cast %44 : vector<1x1x8xf32> to vector<1x8xf32>
    %46 = vector.shape_cast %43 : vector<1x8xf32> to vector<1x1x8xf32>
    tpu.vector_store %arg12[%c0_27, %c0_28, %c0_29], %46 {strides = array<i32>} : memref<1x1x8xf32, #tpu.memory_space<vmem>>, vector<1x1x8xf32>,
    return
  }
  func.func @transform_0(%arg0: i32) -> i32 {
    %c0_i32 = arith.constant 0 : i32
    %c0_i32_0 = arith.constant 0 : i32
    return %c0_i32 : i32
  }
  func.func @transform_1(%arg0: i32) -> (i32, i32) {
    %c0_i32 = arith.constant 0 : i32
    %c0_i32_0 = arith.constant 0 : i32
    return %arg0, %c0_i32 : i32, i32
  }
  func.func @transform_2(%arg0: i32) -> (i32, i32) {
    %c0_i32 = arith.constant 0 : i32
    %c0_i32_0 = arith.constant 0 : i32
    return %arg0, %c0_i32 : i32, i32
  }
  func.func @transform_3(%arg0: i32) -> (i32, i32) {
    %c0_i32 = arith.constant 0 : i32
    %c0_i32_0 = arith.constant 0 : i32
    return %arg0, %c0_i32 : i32, i32
  }
  func.func @transform_4(%arg0: i32) -> (i32, i32) {
    %c0_i32 = arith.constant 0 : i32
    %c0_i32_0 = arith.constant 0 : i32
    %c0_i32_1 = arith.constant 0 : i32
    return %c0_i32, %c0_i32_0 : i32, i32
  }
  func.func @transform_5(%arg0: i32) -> (i32, i32) {
    %c0_i32 = arith.constant 0 : i32
    %c0_i32_0 = arith.constant 0 : i32
    %c0_i32_1 = arith.constant 0 : i32
    return %c0_i32, %c0_i32_0 : i32, i32
  }
  func.func @transform_6(%arg0: i32) -> (i32, i32) {
    %c0_i32 = arith.constant 0 : i32
    %c0_i32_0 = arith.constant 0 : i32
    %c0_i32_1 = arith.constant 0 : i32
    return %c0_i32, %c0_i32_0 : i32, i32
  }
  func.func @transform_7(%arg0: i32) -> (i32, i32) {
    %c0_i32 = arith.constant 0 : i32
    %c0_i32_0 = arith.constant 0 : i32
    %c0_i32_1 = arith.constant 0 : i32
    return %c0_i32, %c0_i32_0 : i32, i32
  }
  func.func @transform_8(%arg0: i32) -> (i32, i32) {
    %c0_i32 = arith.constant 0 : i32
    %c0_i32_0 = arith.constant 0 : i32
    %c0_i32_1 = arith.constant 0 : i32
    return %c0_i32, %c0_i32_0 : i32, i32
  }
  func.func @transform_9(%arg0: i32) -> (i32, i32) {
    %c0_i32 = arith.constant 0 : i32
    %c0_i32_0 = arith.constant 0 : i32
    %c0_i32_1 = arith.constant 0 : i32
    return %c0_i32, %c0_i32_0 : i32, i32
  }
  func.func @transform_10(%arg0: i32) -> (i32, i32) {
    %c0_i32 = arith.constant 0 : i32
    %c0_i32_0 = arith.constant 0 : i32
    %c0_i32_1 = arith.constant 0 : i32
    return %c0_i32, %c0_i32_0 : i32, i32
  }
  func.func @transform_11(%arg0: i32) -> (i32, i32, i32) {
    %c0_i32 = arith.constant 0 : i32
    %c0_i32_0 = arith.constant 0 : i32
    %c0_i32_1 = arith.constant 0 : i32
    return %arg0, %c0_i32, %c0_i32_0 : i32, i32, i32
  }
}

</mosaic_0001>

<llo_original>
// kernel: tpu_custom_call.1
$region0: #{tpu_custom_call.1}
  #allocation0 [shape = 'u32[]', space=smem, size = 0x4, offset = 0x4, fixed_abs, tag = 'smem constant byte address 0x4 - core index']
  #allocation1 [shape = 'u32[72,128]{1,0:T(1,128)}', space=vmem, size = 0x9000, scoped, tag = 'internal scratch']
  %s0 = inlined_call_operand.hbm [shape: f32[2], index: 0, kind: input, shape index: {}]
  %s1 = inlined_call_operand.vmem [shape: f32[8,12], index: 1, kind: input, shape index: {}]
  %s2 = inlined_call_operand.hbm [shape: f32[8,5], index: 2, kind: input, shape index: {}]
  %s3 = inlined_call_operand.vmem [shape: f32[8,3], index: 3, kind: input, shape index: {}]
  %s4 = inlined_call_operand.hbm [shape: f32[12,64], index: 4, kind: input, shape index: {}]
  %s5 = inlined_call_operand.vmem [shape: f32[5,64], index: 5, kind: input, shape index: {}]
  %s6 = inlined_call_operand.hbm [shape: f32[3,64], index: 6, kind: input, shape index: {}]
  %s7 = inlined_call_operand.vmem [shape: f32[1,64], index: 7, kind: input, shape index: {}]
  %s8 = inlined_call_operand.hbm [shape: f32[64,64], index: 8, kind: input, shape index: {}]
  %s9 = inlined_call_operand.vmem [shape: f32[1,64], index: 9, kind: input, shape index: {}]
  %s10 = inlined_call_operand.vmem [shape: f32[1,64], index: 10, kind: input, shape index: {}]
  %s11 = inlined_call_operand.hbm [shape: f32[1,1,8], index: 11, kind: output, shape index: {}]
  %s12 = sld [smem:[#allocation0]]
  $region74: #{tpu_custom_call.1} parent=0
    _
  %s14 = ssub.s32 1, %s12
  %s15 = scalar_select 0, %s14, %s12
  $region1: #{tpu_custom_call.1} parent=0
    #allocation2 [shape = 'u8[512]{0}', space=smem, size = 0x200, scoped, tag = 'input window, operand 0, single buffered']
    #allocation3 [shape = 's32[1]{0}', space=sflag, size = 0x4, scoped, tag = 'scoped memory for tpu_custom_call.1']
    #allocation4 [shape = 's32[1]{0}', space=sflag, size = 0x4, scoped, tag = 'scoped memory for tpu_custom_call.1']
    #allocation5 [shape = 's32[1]{0}', space=sflag, size = 0x4, scoped, tag = 'scoped memory for tpu_custom_call.1']
    #allocation6 [shape = 'u8[4096]{0}', space=vmem, size = 0x1000, scoped, tag = 'input window, operand 2, single buffered']
    #allocation7 [shape = 'u8[8192]{0}', space=vmem, size = 0x2000, scoped, tag = 'input window, operand 4, single buffered']
    #allocation8 [shape = 's32[1]{0}', space=sflag, size = 0x4, scoped, tag = 'scoped memory for tpu_custom_call.1']
    #allocation9 [shape = 'u8[2048]{0}', space=vmem, size = 0x800, scoped, tag = 'input window, operand 6, single buffered']
    #allocation10 [shape = 'u8[32768]{0}', space=vmem, size = 0x8000, scoped, tag = 'input window, operand 8, single buffered']
    #allocation11 [shape = 's32[1]{0}', space=sflag, size = 0x4, scoped, tag = 'scoped memory for tpu_custom_call.1']
    #allocation12 [shape = 'u8[512]{0}', space=vmem, size = 0x400, scoped, tag = 'output window, operand 0, single buffered']
    %16 = vsyncpa [#allocation5], 0
    %17 = vsyncpa [#allocation3], 0
    %18 = vsyncpa [#allocation8], 0
    %19 = vsyncpa [#allocation11], 0
    %20 = vsyncpa [#allocation4], 0
    // Predicated region
    $region2: #{tpu_custom_call.1} parent=1 // pred_check
      _
    $region3: #{tpu_custom_call.1} parent=1 // pred_check_branch
      %22 = sbr.rel (0) target = $region5
    $region4: #{tpu_custom_call.1} parent=1 // pred_region
      %24 = vsyncadd [#allocation5], 0
      %s26 = sshll.u32 %s0, 4
      %s27 = int_to_ptr.hbm [resolvable:$true] %s26
      %29 = dma.hbm_to_smem %s27, 16, [#allocation2], [#allocation5]
    $region5: #{tpu_custom_call.1} parent=1 // pred_fallthru
      _
    // Predicated region
    $region6: #{tpu_custom_call.1} parent=1 // pred_check
      _
    $region7: #{tpu_custom_call.1} parent=1 // pred_check_branch
      %31 = sbr.rel (0) target = $region9
    $region8: #{tpu_custom_call.1} parent=1 // pred_region
      _
    $region9: #{tpu_custom_call.1} parent=1 // pred_fallthru
      _
    // Predicated region
    $region10: #{tpu_custom_call.1} parent=1 // pred_check
      _
    $region11: #{tpu_custom_call.1} parent=1 // pred_check_branch
      %33 = sbr.rel (0) target = $region13
    $region12: #{tpu_custom_call.1} parent=1 // pred_region
      %35 = vsyncadd [#allocation3], 0
      %s37 = sshll.u32 %s2, 4
      %s38 = int_to_ptr.hbm [resolvable:$true] %s37
      %s39 = sshll.u32 [#allocation6], 4
      %s40 = int_to_ptr.vmem [resolvable:$true] %s39
      %42 = dma.hbm_to_vmem [thread:$0]  %s38, 128, %s40, [#allocation3]
    $region13: #{tpu_custom_call.1} parent=1 // pred_fallthru
      _
    // Predicated region
    $region14: #{tpu_custom_call.1} parent=1 // pred_check
      _
    $region15: #{tpu_custom_call.1} parent=1 // pred_check_branch
      %44 = sbr.rel (0) target = $region17
    $region16: #{tpu_custom_call.1} parent=1 // pred_region
      _
    $region17: #{tpu_custom_call.1} parent=1 // pred_fallthru
      _
    // Predicated region
    $region18: #{tpu_custom_call.1} parent=1 // pred_check
      _
    $region19: #{tpu_custom_call.1} parent=1 // pred_check_branch
      %46 = sbr.rel (0) target = $region21
    $region20: #{tpu_custom_call.1} parent=1 // pred_region
      %48 = vsyncadd [#allocation8], 0
      %s49 = sshll.u32 %s4, 4
      %s50 = int_to_ptr.hbm [resolvable:$true] %s49
      %s51 = sshll.u32 [#allocation7], 4
      %s52 = int_to_ptr.vmem [resolvable:$true] %s51
      %57 = dma.hbm_to_vmem [thread:$0]  %s50, 256, %s52, [#allocation8], 128, 128, 8
    $region21: #{tpu_custom_call.1} parent=1 // pred_fallthru
      _
    // Predicated region
    $region22: #{tpu_custom_call.1} parent=1 // pred_check
      _
    $region23: #{tpu_custom_call.1} parent=1 // pred_check_branch
      %59 = sbr.rel (0) target = $region25
    $region24: #{tpu_custom_call.1} parent=1 // pred_region
      _
    $region25: #{tpu_custom_call.1} parent=1 // pred_fallthru
      _
    // Predicated region
    $region26: #{tpu_custom_call.1} parent=1 // pred_check
      _
    $region27: #{tpu_custom_call.1} parent=1 // pred_check_branch
      %61 = sbr.rel (0) target = $region29
    $region28: #{tpu_custom_call.1} parent=1 // pred_region
      %63 = vsyncadd [#allocation8], 0
      %s65 = sshll.u32 %s6, 4
      %s66 = int_to_ptr.hbm [resolvable:$true] %s65
      %s67 = sshll.u32 [#allocation9], 4
      %s68 = int_to_ptr.vmem [resolvable:$true] %s67
      %70 = dma.hbm_to_vmem [thread:$0]  %s66, 64, %s68, [#allocation8]
    $region29: #{tpu_custom_call.1} parent=1 // pred_fallthru
      _
    // Predicated region
    $region30: #{tpu_custom_call.1} parent=1 // pred_check
      _
    $region31: #{tpu_custom_call.1} parent=1 // pred_check_branch
      %72 = sbr.rel (0) target = $region33
    $region32: #{tpu_custom_call.1} parent=1 // pred_region
      _
    $region33: #{tpu_custom_call.1} parent=1 // pred_fallthru
      _
    // Predicated region
    $region34: #{tpu_custom_call.1} parent=1 // pred_check
      _
    $region35: #{tpu_custom_call.1} parent=1 // pred_check_branch
      %74 = sbr.rel (0) target = $region37
    $region36: #{tpu_custom_call.1} parent=1 // pred_region
      %76 = vsyncadd [#allocation11], 0
      %s77 = sshll.u32 %s8, 4
      %s78 = int_to_ptr.hbm [resolvable:$true] %s77
      %s79 = sshll.u32 [#allocation10], 4
      %s80 = int_to_ptr.vmem [resolvable:$true] %s79
      %85 = dma.hbm_to_vmem [thread:$0]  %s78, 1024, %s80, [#allocation11], 128, 128, 8
    $region37: #{tpu_custom_call.1} parent=1 // pred_fallthru
      _
    // Predicated region
    $region38: #{tpu_custom_call.1} parent=1 // pred_check
      _
    $region39: #{tpu_custom_call.1} parent=1 // pred_check_branch
      %87 = sbr.rel (0) target = $region41
    $region40: #{tpu_custom_call.1} parent=1 // pred_region
      _
    $region41: #{tpu_custom_call.1} parent=1 // pred_fallthru
      _
    // Predicated region
    $region42: #{tpu_custom_call.1} parent=1 // pred_check
      _
    $region43: #{tpu_custom_call.1} parent=1 // pred_check_branch
      %89 = sbr.rel (0) target = $region45
    $region44: #{tpu_custom_call.1} parent=1 // pred_region
      _
    $region45: #{tpu_custom_call.1} parent=1 // pred_fallthru
      _
    // Predicated region
    $region46: #{tpu_custom_call.1} parent=1 // pred_check
      _
    $region47: #{tpu_custom_call.1} parent=1 // pred_check_branch
      %91 = sbr.rel (0) target = $region49
    $region48: #{tpu_custom_call.1} parent=1 // pred_region
      %93 = dma.done [#allocation5], 16
    $region49: #{tpu_custom_call.1} parent=1 // pred_fallthru
      _
    // Predicated region
    $region50: #{tpu_custom_call.1} parent=1 // pred_check
      _
    $region51: #{tpu_custom_call.1} parent=1 // pred_check_branch
      %95 = sbr.rel (0) target = $region53
    $region52: #{tpu_custom_call.1} parent=1 // pred_region
      %97 = dma.done [#allocation3], 128
    $region53: #{tpu_custom_call.1} parent=1 // pred_fallthru
      _
    // Predicated region
    $region54: #{tpu_custom_call.1} parent=1 // pred_check
      _
    $region55: #{tpu_custom_call.1} parent=1 // pred_check_branch
      %99 = sbr.rel (0) target = $region57
    $region56: #{tpu_custom_call.1} parent=1 // pred_region
      %101 = dma.done [#allocation8], 256
    $region57: #{tpu_custom_call.1} parent=1 // pred_fallthru
      _
    // Predicated region
    $region58: #{tpu_custom_call.1} parent=1 // pred_check
      _
    $region59: #{tpu_custom_call.1} parent=1 // pred_check_branch
      %103 = sbr.rel (0) target = $region61
    $region60: #{tpu_custom_call.1} parent=1 // pred_region
      %105 = dma.done [#allocation8], 64
    $region61: #{tpu_custom_call.1} parent=1 // pred_fallthru
      _
    // Predicated region
    $region62: #{tpu_custom_call.1} parent=1 // pred_check
      _
    $region63: #{tpu_custom_call.1} parent=1 // pred_check_branch
      %107 = sbr.rel (0) target = $region65
    $region64: #{tpu_custom_call.1} parent=1 // pred_region
      %109 = dma.done [#allocation11], 1024
    $region65: #{tpu_custom_call.1} parent=1 // pred_fallthru
      _
    %110 = sfence
    %v112 = vld [vmem:[%s1] sm:$0xff]
    %v113 = vpack.c.bf16 %v112, %v112
    %v114 = vld [vmem:[#allocation6] sm:$0xff]
    %v115 = vpack.c.bf16 %v114, %v114
    %v116 = vld [vmem:[%s3] sm:$0xff]
    %v117 = vpack.c.bf16 %v116, %v116
    %v118 = vld [vmem:[#allocation7] sm:$0xff]
    %v119 = vld [vmem:[#allocation7 + $0x8] sm:$0xf]
    %v120 = vpack.c.bf16 %v119, %v118
    %v121 = vld [vmem:[%s5] sm:$0x1f]
    %v122 = vpack.c.bf16 %v121, %v121
    %vm123 = vcmask 39936
    %v125 = vsel %vm123, %v115, 0
    %vm127 = vcmask 1041408
    %vm128 = vcmask 1042432
    %v129 = vsel %vm127, 4294967295, 65535
    %v130 = vsel %vm128, %v129, 0
    %v132 = vand.u32 %v122, %v130
    %134 = vmatpush.bf16.msra.mxu0 0
    %135 = vmatpush.bf16.msra.mxu0 0
    %136 = vmatpush.bf16.msra.mxu0 0
    %137 = vmatpush.bf16.msra.mxu0 0
    %138 = vmatpush.bf16.msra.mxu0 0
    %139 = vmatpush.bf16.msra.mxu0 0
    %140 = vmatpush.bf16.msra.mxu0 0
    %141 = vmatpush.bf16.msra.mxu0 %v132
    %142 = vmatmul.bf16.gmra.mxu0 %v125
    %v143 = vpop.f32.mrf.mxu0
    %v144 = vadd.f32 0.0, %v143
    %v145 = vpop.f32.mrf.mxu0
    %146 = vdwg.mxu0
    %vm147 = vcmask 97280
    %v149 = vsel %vm147, %v113, 0
    %vm151 = vcmask 1045504
    %v153 = vsel %vm151, %v120, 0
    %155 = vmatpush.bf16.msra.mxu0 0
    %156 = vmatpush.bf16.msra.mxu0 0
    %157 = vmatpush.bf16.msra.mxu0 0
    %158 = vmatpush.bf16.msra.mxu0 0
    %159 = vmatpush.bf16.msra.mxu0 0
    %160 = vmatpush.bf16.msra.mxu0 0
    %161 = vmatpush.bf16.msra.mxu0 0
    %162 = vmatpush.bf16.msra.mxu0 %v153
    %163 = vmatmul.bf16.gmra.mxu0 %v149
    %v164 = vpop.f32.mrf.mxu0
    %v165 = vadd.f32 %v144, %v164
    %v166 = vpop.f32.mrf.mxu0
    %167 = vdwg.mxu0
    %v168 = vld [vmem:[#allocation9] sm:$0x7]
    %v169 = vpack.c.bf16 %v168, %v168
    %vm170 = vcmask 23552
    %v172 = vsel %vm170, %v117, 0
    %vm174 = vcmask 1040384
    %v175 = vsel %vm174, 4294967295, 65535
    %v176 = vsel %vm127, %v175, 0
    %v178 = vand.u32 %v169, %v176
    %180 = vmatpush.bf16.msra.mxu0 0
    %181 = vmatpush.bf16.msra.mxu0 0
    %182 = vmatpush.bf16.msra.mxu0 0
    %183 = vmatpush.bf16.msra.mxu0 0
    %184 = vmatpush.bf16.msra.mxu0 0
    %185 = vmatpush.bf16.msra.mxu0 0
    %186 = vmatpush.bf16.msra.mxu0 0
    %187 = vmatpush.bf16.msra.mxu0 %v178
    %188 = vmatmul.bf16.gmra.mxu0 %v172
    %v189 = vpop.f32.mrf.mxu0
    %v190 = vadd.f32 0.0, %v189
    %v191 = vpop.f32.mrf.mxu0
    %192 = vdwg.mxu0
    %v193 = vadd.f32 %v165, %v190
    %v194 = vld [vmem:[%s7] sm:$0x1]
    %v196 = vperm.slane %v194, 0
    %v198 = vadd.f32 %v193, %v196
    %v199 = vmax.f32 %v198, 0.0
    %v200 = vpack.c.bf16 %v199, %v199
    %v201 = vld [vmem:[#allocation10] sm:$0xff]
    %v202 = vld [vmem:[#allocation10 + $0x8] sm:$0xff]
    %v203 = vld [vmem:[#allocation10 + $0x10] sm:$0xff]
    %v204 = vld [vmem:[#allocation10 + $0x18] sm:$0xff]
    %v205 = vld [vmem:[#allocation10 + $0x20] sm:$0xff]
    %v206 = vld [vmem:[#allocation10 + $0x28] sm:$0xff]
    %v207 = vld [vmem:[#allocation10 + $0x30] sm:$0xff]
    %v208 = vld [vmem:[#allocation10 + $0x38] sm:$0xff]
    %v209 = vpack.c.bf16 %v202, %v201
    %v210 = vpack.c.bf16 %v204, %v203
    %v211 = vpack.c.bf16 %v206, %v205
    %v212 = vpack.c.bf16 %v208, %v207
    %v213 = vld [vmem:[%s9] sm:$0x1]
    %v215 = vperm.slane %v213, 0
    %vm217 = vcmask 523264
    %v219 = vsel %vm217, %v200, 0
    %221 = vmatpush.bf16.msra.mxu0 0
    %222 = vmatpush.bf16.msra.mxu0 0
    %223 = vmatpush.bf16.msra.mxu0 0
    %224 = vmatpush.bf16.msra.mxu0 0
    %225 = vmatpush.bf16.msra.mxu0 %v212
    %226 = vmatpush.bf16.msra.mxu0 %v211
    %227 = vmatpush.bf16.msra.mxu0 %v210
    %228 = vmatpush.bf16.msra.mxu0 %v209
    %229 = vmatmul.bf16.gmra.mxu0 %v219
    %v230 = vpop.f32.mrf.mxu0
    %v231 = vadd.f32 %v215, %v230
    %v232 = vpop.f32.mrf.mxu0
    %233 = vdwg.mxu0
    %v234 = vmax.f32 %v231, 0.0
    %v235 = vld [vmem:[%s10] sm:$0x1]
    %s236 = sld [smem:[#allocation2]]
    %v237 = vstv %s236
    %v239 = vsel %vm217, %v235, 0
    %v242 = vsel %vm217, %v234, 0
    %244 = vmatpush.xpose.msra.mxu0 0.0
    %245 = vmatpush.xpose.msra.mxu0 0.0
    %246 = vmatpush.xpose.msra.mxu0 0.0
    %247 = vmatpush.xpose.msra.mxu0 0.0
    %248 = vmatpush.xpose.msra.mxu0 0.0
    %249 = vmatpush.xpose.msra.mxu0 0.0
    %250 = vmatpush.xpose.msra.mxu0 0.0
    %251 = vmatpush.xpose.msra.mxu0 0.0
    %252 = vmatpush.xpose.msra.mxu0 0.0
    %253 = vmatpush.xpose.msra.mxu0 0.0
    %254 = vmatpush.xpose.msra.mxu0 0.0
    %255 = vmatpush.xpose.msra.mxu0 0.0
    %256 = vmatpush.xpose.msra.mxu0 0.0
    %257 = vmatpush.xpose.msra.mxu0 0.0
    %258 = vmatpush.xpose.msra.mxu0 0.0
    %259 = vmatpush.xpose.msra.mxu0 %v242
    %260 = vmatmul.f32.gmra.mxu0 %v239
    %v261 = vpop.f32.mrf.mxu0
    %v262 = vadd.f32 %v237, %v261
    %263 = vdwg.mxu0
    %v264 = vxor.u32 %v262, 2147483648
    %v265 = vmul.f32 %v264, 1.442695
    %v266 = vpow.pop %v265
    %v267 = vadd.f32 %v266, 1.0
    %v268 = vrcp.pop %v267
    %v269 = vmul.f32 %v267, %v268
    %v270 = vsub.f32 1.0, %v269
    %v271 = vmul.f32 %v268, %v270
    %v272 = vadd.f32 %v268, %v271
    %vm273 = vweird.f32 %v267
    %vm274 = vweird.f32 %v268
    %vm275 = vmor %vm273, %vm274
    %v276 = vsel %vm275, %v268, %v272
    %v277 = vand.u32 2147483647, %v267
    %vm278 = vcmp.eq.f32.partialorder %v277, 8.507059e+37
    %v279 = vand.u32 %v267, 2147483648
    %v280 = vor.u32 1.1754944e-38, %v279
    %v281 = vsel %vm278, %v280, %v276
    %v282 = vmul.f32 1.0, %v281
    %s283 = sld [smem:[#allocation2 + $0x1]]
    %v284 = vstv %s283
    %v285 = vmul.f32 %v282, %v284
    %vm286 = vcmask 57344
    %287 = vst.msk [vmem:[#allocation12] sm:$0x1] %vm286, %v285
    // Predicated region
    $region66: #{tpu_custom_call.1} parent=1 // pred_check
      _
    $region67: #{tpu_custom_call.1} parent=1 // pred_check_branch
      %289 = sbr.rel (0) target = $region69
    $region68: #{tpu_custom_call.1} parent=1 // pred_region
      %291 = vsyncadd [#allocation4], 0
      %s293 = sshll.u32 [#allocation12], 4
      %s294 = int_to_ptr.vmem [resolvable:$true] %s293
      %s295 = sshll.u32 %s11, 4
      %s296 = int_to_ptr.hbm [resolvable:$true] %s295
      %298 = dma.vmem_to_hbm [thread:$0]  %s294, 16, %s296, [#allocation4]
    $region69: #{tpu_custom_call.1} parent=1 // pred_fallthru
      _
    // Predicated region
    $region70: #{tpu_custom_call.1} parent=1 // pred_check
      _
    $region71: #{tpu_custom_call.1} parent=1 // pred_check_branch
      %300 = sbr.rel (0) target = $region73
    $region72: #{tpu_custom_call.1} parent=1 // pred_region
      %302 = dma.done [#allocation4], 16
    $region73: #{tpu_custom_call.1} parent=1 // pred_fallthru
      _
    %303 = vsyncpa [#allocation3], 1
    %304 = vsyncpa [#allocation8], 1
    %305 = vsyncpa [#allocation11], 1
    %306 = vsyncpa [#allocation4], 1
    %307 = vsyncpa [#allocation5], 1

</llo_original>
